<compile_context>
chip_gen: v7x
topology: tpu7x:2x2x1
jax: 0.10.0
libtpu: 0.0.40
codegen_flags: <defaults>
</compile_context>

<pallas_src>
import functools
import math

import jax
import jax.numpy as jnp
from jax.experimental import pallas as pl
from jax.experimental.pallas import tpu as pltpu


# ----------------------------------------------------------------------------
# Kernel: per-row  sum_v q_v * (log q_v - log_softmax(logit)_v)
# ----------------------------------------------------------------------------
def _label_smoothing_kernel(logit_ref, target_ref, row_ref, *,
                            confidence, smoothing, log_conf, log_smooth):
    x = logit_ref[...].astype(jnp.float32)                 # (Bb, V)
    t = target_ref[...]                                    # (Bb, 1) int32

    # log_softmax over classes (lanes), numerically stable.
    m = jnp.max(x, axis=1, keepdims=True)                  # (Bb, 1)
    z = x - m
    lse = jnp.log(jnp.sum(jnp.exp(z), axis=1, keepdims=True))
    logp = z - lse                                         # (Bb, V)

    # Scatter-equivalent: one-hot via iota compare, selected with jnp.where.
    col = jax.lax.broadcasted_iota(jnp.int32, x.shape, 1)  # (Bb, V)
    is_t = col == t                                        # broadcast (Bb,1)->(Bb,V)
    q = jnp.where(is_t, confidence, smoothing)             # target_prob
    q_log_q = jnp.where(is_t, confidence * log_conf, smoothing * log_smooth)

    # kl_div(logp, q, reduction='none') = q * (log q - logp); q > 0 everywhere.
    kl = q_log_q - q * logp                                # (Bb, V)
    row_ref[...] = jnp.sum(kl, axis=1, keepdims=True)      # (Bb, 1)


# ----------------------------------------------------------------------------
# Wrapper
# ----------------------------------------------------------------------------
def label_smoothing_loss(logit, target, *, label_smoothing, block_b=256):
    """logit: (B, V) float, target: (B,) int.  Returns scalar loss (f32)."""
    B, V = logit.shape
    assert 0.0 < label_smoothing <= 0.5
    confidence = 1.0 - label_smoothing
    smoothing = label_smoothing / (V - 1)

    # Batch tiling: single tile for small B; otherwise pad B up to a multiple
    # of block_b (multiple of 8 sublanes) and slice padded rows out afterwards.
    if B <= block_b:
        bb, Bp = B, B
        logit_p, target_p = logit, target
    else:
        bb = block_b
        Bp = pl.cdiv(B, bb) * bb
        logit_p = jnp.pad(logit, ((0, Bp - B), (0, 0)))
        target_p = jnp.pad(target, ((0, Bp - B),))
    nb = Bp // bb

    target2 = target_p.astype(jnp.int32).reshape(Bp, 1)

    kern = functools.partial(
        _label_smoothing_kernel,
        confidence=confidence, smoothing=smoothing,
        log_conf=math.log(confidence), log_smooth=math.log(smoothing))

    rows = pl.pallas_call(
        kern,
        out_shape=jax.ShapeDtypeStruct((Bp, 1), jnp.float32),
        grid=(nb,),
        in_specs=[pl.BlockSpec((bb, V), lambda i: (i, 0)),
                  pl.BlockSpec((bb, 1), lambda i: (i, 0))],
        out_specs=pl.BlockSpec((bb, 1), lambda i: (i, 0)),
        compiler_params=pltpu.CompilerParams(
            dimension_semantics=("parallel",)),    # v7x: shard batch over 2 TCs
    )(logit_p, target2)

    # .sum(1) is done in-kernel; .mean(0) over B scalars here (negligible).
    return jnp.mean(rows[:B, 0])


# ----------------------------------------------------------------------------
# Pure-JAX reference (mirrors the PyTorch module) for a correctness check.
# ----------------------------------------------------------------------------
def _reference(logit, target, label_smoothing):
    B, V = logit.shape
    confidence = 1.0 - label_smoothing
    smoothing = label_smoothing / (V - 1)
    q = jnp.full((B, V), smoothing, jnp.float32)
    q = q.at[jnp.arange(B), target].set(confidence)
    logp = jax.nn.log_softmax(logit.astype(jnp.float32), axis=1)
    kl = q * (jnp.log(q) - logp)
    return kl.sum(1).mean(0)


if __name__ == "__main__":
    key = jax.random.PRNGKey(0)
    k_logit, k_tgt = jax.random.split(key)

    batch_size, vocab_size = 8, 128          # lane-dense vocab, sublane-dense batch
    label_smoothing = 0.1

    logit = jax.random.normal(k_logit, (batch_size, vocab_size), jnp.float32)
    target = jax.random.randint(k_tgt, (batch_size,), 0, vocab_size, jnp.int32)

    loss = label_smoothing_loss(logit, target, label_smoothing=label_smoothing)
    jax.block_until_ready(loss)

    ref = _reference(logit, target, label_smoothing)
    assert loss.shape == ()
    assert jnp.allclose(loss, ref, rtol=1e-5, atol=1e-5), (loss, ref)
    print("KERNEL_OK")
</pallas_src>

<mosaic_0001>
module attributes {stable_mosaic.version = 11 : i64} {
  func.func @_label_smoothing_kernel(%arg0: i32, %arg1: memref<8x128xf32, #tpu.memory_space<vmem>>, %arg2: memref<8x1xi32, #tpu.memory_space<vmem>>, %arg3: memref<8x1xf32, #tpu.memory_space<vmem>>) attributes {dimension_semantics = [#tpu.dimension_semantics<parallel>], iteration_bounds = array<i64: 1>, scalar_prefetch = 0 : i64, scratch_operands = 0 : i64, tpu.core_type = #tpu.core_type<tc>, window_params = [{transform_indices = @transform_0, window_bounds = array<i64: 8, 128>}, {transform_indices = @transform_1, window_bounds = array<i64: 8, 1>}, {transform_indices = @transform_2, window_bounds = array<i64: 8, 1>}]} {
    %c0 = arith.constant 0 : index
    %c0_0 = arith.constant 0 : index
    %0 = vector.load %arg1[%c0, %c0_0] : memref<8x128xf32, #tpu.memory_space<vmem>>, vector<8x128xf32>
    %c0_1 = arith.constant 0 : index
    %c0_2 = arith.constant 0 : index
    %1 = vector.load %arg2[%c0_1, %c0_2] : memref<8x1xi32, #tpu.memory_space<vmem>>, vector<8x1xi32>
    %cst = arith.constant dense<0xFF800000> : vector<8xf32>
    %2 = vector.multi_reduction <maximumf>, %0, %cst [1] : vector<8x128xf32> to vector<8xf32>
    %3 = vector.shape_cast %2 : vector<8xf32> to vector<8x1xf32>
    %4 = vector.broadcast %3 : vector<8x1xf32> to vector<8x128xf32>
    %5 = arith.subf %0, %4 : vector<8x128xf32>
    %6 = math.exp %5 : vector<8x128xf32>
    %cst_3 = arith.constant dense<0.000000e+00> : vector<8xf32>
    %7 = vector.multi_reduction <add>, %6, %cst_3 [1] : vector<8x128xf32> to vector<8xf32>
    %8 = vector.shape_cast %7 : vector<8xf32> to vector<8x1xf32>
    %9 = math.log %8 : vector<8x1xf32>
    %10 = vector.broadcast %9 : vector<8x1xf32> to vector<8x128xf32>
    %11 = arith.subf %5, %10 : vector<8x128xf32>
    %12 = tpu.iota {dimensions = array<i32: 1>} : vector<8x128xi32>
    %13 = vector.broadcast %1 : vector<8x1xi32> to vector<8x128xi32>
    %14 = arith.cmpi eq, %12, %13 : vector<8x128xi32>
    %cst_4 = arith.constant 0.899999976 : f32
    %cst_5 = arith.constant 7.87401571E-4 : f32
    %15 = vector.broadcast %cst_4 : f32 to vector<8x128xf32>
    %16 = vector.broadcast %cst_5 : f32 to vector<8x128xf32>
    %17 = arith.select %14, %15, %16 : vector<8x128xi1>, vector<8x128xf32>
    %cst_6 = arith.constant -0.0948244631 : f32
    %cst_7 = arith.constant -0.00562737975 : f32
    %18 = vector.broadcast %cst_6 : f32 to vector<8x128xf32>
    %19 = vector.broadcast %cst_7 : f32 to vector<8x128xf32>
    %20 = arith.select %14, %18, %19 : vector<8x128xi1>, vector<8x128xf32>
    %21 = arith.mulf %17, %11 : vector<8x128xf32>
    %22 = arith.subf %20, %21 : vector<8x128xf32>
    %cst_8 = arith.constant dense<0.000000e+00> : vector<8xf32>
    %23 = vector.multi_reduction <add>, %22, %cst_8 [1] : vector<8x128xf32> to vector<8xf32>
    %24 = vector.shape_cast %23 : vector<8xf32> to vector<8x1xf32>
    %c0_9 = arith.constant 0 : index
    %c0_10 = arith.constant 0 : index
    %25 = vector.load %arg3[%c0_9, %c0_10] : memref<8x1xf32, #tpu.memory_space<vmem>>, vector<8x1xf32>
    tpu.vector_store %arg3[%c0_9, %c0_10], %24 {strides = array<i32>} : memref<8x1xf32, #tpu.memory_space<vmem>>, vector<8x1xf32>,
    return
  }
  func.func @transform_0(%arg0: i32) -> (i32, i32) {
    %c0_i32 = arith.constant 0 : i32
    %c0_i32_0 = arith.constant 0 : i32
    return %arg0, %c0_i32 : i32, i32
  }
  func.func @transform_1(%arg0: i32) -> (i32, i32) {
    %c0_i32 = arith.constant 0 : i32
    %c0_i32_0 = arith.constant 0 : i32
    return %arg0, %c0_i32 : i32, i32
  }
  func.func @transform_2(%arg0: i32) -> (i32, i32) {
    %c0_i32 = arith.constant 0 : i32
    %c0_i32_0 = arith.constant 0 : i32
    return %arg0, %c0_i32 : i32, i32
  }
}

</mosaic_0001>

<llo_original>
// kernel: tpu_custom_call.1
$region0: #{tpu_custom_call.1}
  #allocation0 [shape = 'u32[]', space=smem, size = 0x4, offset = 0x4, fixed_abs, tag = 'smem constant byte address 0x4 - core index']
  #allocation1 [shape = 'u32[144,128]{1,0:T(1,128)}', space=vmem, size = 0x12000, scoped, tag = 'internal scratch']
  %s0 = inlined_call_operand.vmem [shape: f32[8,128], index: 0, kind: input, shape index: {}]
  %s1 = inlined_call_operand.vmem [shape: s32[8,1], index: 1, kind: input, shape index: {}]
  %s2 = inlined_call_operand.vmem [shape: f32[8,1], index: 2, kind: output, shape index: {}]
  %s3 = sld [smem:[#allocation0]]
  $region18: #{tpu_custom_call.1} parent=0
    _
  %s5 = ssub.s32 1, %s3
  %s6 = scalar_select 0, %s5, %s3
  // Predicated region
  $region2: #{tpu_custom_call.1} parent=0 // pred_check
    _
  $region3: #{tpu_custom_call.1} parent=0 // pred_check_branch
    %8 = sbr.rel (0) target = $region5
  $region4: #{tpu_custom_call.1} parent=0 // pred_region
    _
  $region5: #{tpu_custom_call.1} parent=0 // pred_fallthru
    _
  // Predicated region
  $region6: #{tpu_custom_call.1} parent=0 // pred_check
    _
  $region7: #{tpu_custom_call.1} parent=0 // pred_check_branch
    %10 = sbr.rel (0) target = $region9
  $region8: #{tpu_custom_call.1} parent=0 // pred_region
    _
  $region9: #{tpu_custom_call.1} parent=0 // pred_fallthru
    _
  %v11 = vld [vmem:[%s0] sm:$0xff]
  %v12 = vld [vmem:[%s1] sm:$0xff]
  %13 = vmax.xlane.f32.xlu0 %v11
  %v14 = vpop.xlane.xlu0 %13
  %v15 = vsub.f32 %v11, %v14
  %v16 = vmul.f32 %v15, 1.442695
  %v17 = vpow.pop %v16
  %18 = vadd.xlane.f32.xlu0 %v17
  %v19 = vpop.xlane.xlu0 %18
  %v20 = vlog2.pop %v19
  %v21 = vmul.f32 %v20, 0.6931472
  %v22 = vsub.f32 %v15, %v21
  %v23 = vlaneseq
  %v24 = vand.u32 %v23, 127
  %25 = vset.pattern.permute.xlu0 0
  %26 = vperm.xlu0 %25, %v12
  %v27 = vpop.permute.xlu0 %26
  %vm28 = vcmp.eq.s32.totalorder %v24, %v27
  %v29 = vsel %vm28, 0.9, 0.0007874016
  %v30 = vsel %vm28, -0.09482446, -0.0056273798
  %v31 = vmul.f32 %v29, %v22
  %v32 = vsub.f32 %v30, %v31
  %33 = vadd.xlane.f32.xlu0 %v32
  %v34 = vpop.xlane.xlu0 %33
  %vm35 = vcmask 7168
  %36 = vst.msk [vmem:[%s2] sm:$0xff] %vm35, %v34
  // Predicated region
  $region10: #{tpu_custom_call.1} parent=0 // pred_check
    _
  $region11: #{tpu_custom_call.1} parent=0 // pred_check_branch
    %38 = sbr.rel (0) target = $region13
  $region12: #{tpu_custom_call.1} parent=0 // pred_region
    _
  $region13: #{tpu_custom_call.1} parent=0 // pred_fallthru
    _
  // Predicated region
  $region14: #{tpu_custom_call.1} parent=0 // pred_check
    _
  $region15: #{tpu_custom_call.1} parent=0 // pred_check_branch
    %40 = sbr.rel (0) target = $region17
  $region16: #{tpu_custom_call.1} parent=0 // pred_region
    _
  $region17: #{tpu_custom_call.1} parent=0 // pred_fallthru
    _

</llo_original>
